<compile_context>
chip_gen: v5e
topology: v5e:2x2
jax: 0.10.0
libtpu: 0.0.40
codegen_flags: <defaults>
</compile_context>

<pallas_src>
import jax
import jax.numpy as jnp
from jax.experimental import pallas as pl
from jax.experimental.pallas import tpu as pltpu


def _round_up(n, m):
    return ((n + m - 1) // m) * m


# ---------------------------------------------------------------------------
# Kernel: fused 3-layer MLP on one batch tile.
# ---------------------------------------------------------------------------
def mlp_kernel(x_ref, w0_ref, b0_ref, w1_ref, b1_ref, w2_ref, b2_ref, o_ref):
    # f32 x tile straight from HBM; cast to bf16 on the VPU in VMEM
    # (4 B/elem of input traffic instead of 4+2+2 with a wrapper-side cast).
    x = x_ref[...].astype(jnp.bfloat16)

    # bf16 operands into the MXU, f32 accumulation; bias add / ReLU / casts
    # stay f32 (v5e has no bf16 VPU, a bf16 epilogue buys nothing there).
    h0 = jnp.dot(x, w0_ref[...], preferred_element_type=jnp.float32) + b0_ref[...]
    h0 = jnp.maximum(h0, 0.0).astype(jnp.bfloat16)

    h1 = jnp.dot(h0, w1_ref[...], preferred_element_type=jnp.float32) + b1_ref[...]
    h1 = jnp.maximum(h1, 0.0).astype(jnp.bfloat16)

    out = jnp.dot(h1, w2_ref[...], preferred_element_type=jnp.float32) + b2_ref[...]
    o_ref[...] = out.astype(o_ref.dtype)
    # Dropout == identity in eval mode.
    # TODO(synk): training-mode dropout via pltpu.prng_seed / prng_random_bits.


# ---------------------------------------------------------------------------
# Tiling & wrapper
# ---------------------------------------------------------------------------
def _choose_batch_tile(batch, cap):
    """Largest batch tile that comfortably fits VMEM, with >= 2 grid steps for
    batches big enough to benefit from v7x's two TensorCores (megacore)."""
    if batch <= 1024:
        return batch                             # single step
    if batch <= cap:
        return _round_up((batch + 1) // 2, 8)    # 2 "parallel" steps (v7x)
    return cap


def neural_net_forward(x, params, *, batch_tile=None, batch_tile_cap=8192):
    """Fused MLP forward.  `params` must come from `prepare_params` (bf16
    weights / f32 (1, H) biases, cast once, not per call)."""
    (w0, b0), (w1, b1), (w2, b2) = params
    batch, d_in = x.shape
    h0, h1, d_out = w0.shape[1], w1.shape[1], w2.shape[1]
    assert w0.shape[0] == d_in and w1.shape[0] == h0 and w2.shape[0] == h1
    assert d_out == d_in

    if batch_tile is None:
        batch_tile = _choose_batch_tile(batch, batch_tile_cap)
    # (8, 128)-rule: a tile smaller than the batch must be sublane-aligned;
    # a full-batch tile may be any size (block dim == full array dim).
    batch_tile = min(_round_up(batch_tile, 8), batch)

    # No wrapper-side pad / slice: ceil-divided grid; Pallas clips the DMAs of
    # the (possibly ragged) boundary block, and since every row is computed
    # independently the clipped garbage rows never reach the output.
    grid = (pl.cdiv(batch, batch_tile),)

    # Weights/biases are tiny and revisited every step: a constant block index
    # keeps them resident in VMEM (no per-step re-DMA).
    const = lambda shape: pl.BlockSpec(shape, lambda i: (0, 0))

    return pl.pallas_call(
        mlp_kernel,
        out_shape=jax.ShapeDtypeStruct((batch, d_out), jnp.float32),
        grid=grid,
        in_specs=[
            pl.BlockSpec((batch_tile, d_in), lambda i: (i, 0)),   # x tile
            const((d_in, h0)),  const((1, h0)),                   # layer 0
            const((h0, h1)),    const((1, h1)),                   # layer 1
            const((h1, d_out)), const((1, d_out)),                # layer 2
        ],
        out_specs=pl.BlockSpec((batch_tile, d_out), lambda i: (i, 0)),
        compiler_params=pltpu.CompilerParams(
            dimension_semantics=("parallel",),
            vmem_limit_bytes=32 * 1024 * 1024,
        ),
    )(x, w0, b0, w1, b1, w2, b2)


# ---------------------------------------------------------------------------
# Parameters & references
# ---------------------------------------------------------------------------
def init_params(key, input_dim, hidden_units):
    """Deterministic init mimicking PyTorch nn.Linear (U(-1/sqrt(in), 1/sqrt(in)))."""
    dims = [input_dim] + list(hidden_units) + [input_dim]
    params = []
    for d_in, d_out in zip(dims[:-1], dims[1:]):
        key, kw, kb = jax.random.split(key, 3)
        bound = 1.0 / jnp.sqrt(jnp.float32(d_in))
        # stored as [in, out] (pre-transposed relative to PyTorch's [out, in])
        w = jax.random.uniform(kw, (d_in, d_out), jnp.float32, -bound, bound)
        b = jax.random.uniform(kb, (1, d_out), jnp.float32, -bound, bound)
        params.append((w, b))
    return params


def prepare_params(params):
    """One-time cast: bf16 weights (full MXU rate, half the weight DMA) and
    f32 (1, H) biases.  Call once at init, not once per forward pass."""
    return [(jnp.asarray(w, jnp.bfloat16),
             jnp.asarray(b, jnp.float32).reshape(1, -1)) for w, b in params]


def reference_forward_f32(x, params):
    """Pure-f32 reference of the eval-mode forward pass (original semantics)."""
    (w0, b0), (w1, b1), (w2, b2) = params
    h = jnp.maximum(x @ w0 + b0, 0.0)
    h = jnp.maximum(h @ w1 + b1, 0.0)
    return h @ w2 + b2


def reference_forward_bf16(x, params):
    """Pure-JAX reference using the same bf16-in / f32-accumulate recipe as the kernel."""
    (w0, b0), (w1, b1), (w2, b2) = params
    bf = jnp.bfloat16
    h = jnp.dot(x.astype(bf), w0.astype(bf), preferred_element_type=jnp.float32) + b0
    h = jnp.maximum(h, 0.0)
    h = jnp.dot(h.astype(bf), w1.astype(bf), preferred_element_type=jnp.float32) + b1
    h = jnp.maximum(h, 0.0)
    return jnp.dot(h.astype(bf), w2.astype(bf), preferred_element_type=jnp.float32) + b2


if __name__ == "__main__":
    key = jax.random.PRNGKey(0)
    kx, kx2, kp = jax.random.split(key, 3)

    batch = 16
    input_dim = 32
    hidden_units = [64, 32]

    x = jax.random.normal(kx, (batch, input_dim), jnp.float32)
    raw_params = init_params(kp, input_dim, hidden_units)
    params = prepare_params(raw_params)          # cast once, reuse every call

    # Single-tile path (whole batch in one grid step).
    out = jax.block_until_ready(neural_net_forward(x, params))
    assert out.shape == (batch, input_dim)

    # Tight check against a bf16-matched reference (same matmul recipe).
    ref_bf16 = reference_forward_bf16(x, raw_params)
    assert jnp.allclose(out, ref_bf16, atol=5e-3, rtol=5e-3)
    # Loose sanity check against the original pure-f32 semantics.
    ref_f32 = reference_forward_f32(x, raw_params)
    assert jnp.allclose(out, ref_f32, atol=0.1)

    # Multi-step grid path (resident weights + "parallel" batch axis).
    x2 = jax.random.normal(kx2, (48, input_dim), jnp.float32)
    out2 = jax.block_until_ready(neural_net_forward(x2, params, batch_tile=16))
    assert out2.shape == (48, input_dim)
    assert jnp.allclose(out2, reference_forward_bf16(x2, raw_params),
                        atol=5e-3, rtol=5e-3)

    print("KERNEL_OK")
</pallas_src>

<mosaic_0001>
module attributes {stable_mosaic.version = 11 : i64} {
  func.func @mlp_kernel(%arg0: i32, %arg1: memref<16x32xf32, #tpu.memory_space<vmem>>, %arg2: memref<32x64xbf16, #tpu.memory_space<vmem>>, %arg3: memref<1x64xf32, #tpu.memory_space<vmem>>, %arg4: memref<64x32xbf16, #tpu.memory_space<vmem>>, %arg5: memref<1x32xf32, #tpu.memory_space<vmem>>, %arg6: memref<32x32xbf16, #tpu.memory_space<vmem>>, %arg7: memref<1x32xf32, #tpu.memory_space<vmem>>, %arg8: memref<16x32xf32, #tpu.memory_space<vmem>>) attributes {dimension_semantics = [#tpu.dimension_semantics<parallel>], iteration_bounds = array<i64: 1>, scalar_prefetch = 0 : i64, scratch_operands = 0 : i64, tpu.core_type = #tpu.core_type<tc>, window_params = [{transform_indices = @transform_0, window_bounds = array<i64: 16, 32>}, {pipeline_mode = #tpu.pipeline_mode<synchronous>, transform_indices = @transform_1, window_bounds = array<i64: 32, 64>}, {pipeline_mode = #tpu.pipeline_mode<synchronous>, transform_indices = @transform_2, window_bounds = array<i64: 1, 64>}, {pipeline_mode = #tpu.pipeline_mode<synchronous>, transform_indices = @transform_3, window_bounds = array<i64: 64, 32>}, {pipeline_mode = #tpu.pipeline_mode<synchronous>, transform_indices = @transform_4, window_bounds = array<i64: 1, 32>}, {pipeline_mode = #tpu.pipeline_mode<synchronous>, transform_indices = @transform_5, window_bounds = array<i64: 32, 32>}, {pipeline_mode = #tpu.pipeline_mode<synchronous>, transform_indices = @transform_6, window_bounds = array<i64: 1, 32>}, {transform_indices = @transform_7, window_bounds = array<i64: 16, 32>}]} {
    %c0 = arith.constant 0 : index
    %c0_0 = arith.constant 0 : index
    %0 = vector.load %arg1[%c0, %c0_0] : memref<16x32xf32, #tpu.memory_space<vmem>>, vector<16x32xf32>
    %1 = arith.truncf %0 : vector<16x32xf32> to vector<16x32xbf16>
    %c0_1 = arith.constant 0 : index
    %c0_2 = arith.constant 0 : index
    %2 = vector.load %arg2[%c0_1, %c0_2] : memref<32x64xbf16, #tpu.memory_space<vmem>>, vector<32x64xbf16>
    %cst = arith.constant dense<0.000000e+00> : vector<16x64xf32>
    %3 = tpu.matmul %1, %2, %cst {dimension_numbers = #tpu.dot_dimension_numbers<[1], [0], [0], [1], [0, 0, 1, 1], [], []>} : vector<16x32xbf16>, vector<32x64xbf16>, vector<16x64xf32> -> vector<16x64xf32>
    %c0_3 = arith.constant 0 : index
    %c0_4 = arith.constant 0 : index
    %4 = vector.load %arg3[%c0_3, %c0_4] : memref<1x64xf32, #tpu.memory_space<vmem>>, vector<1x64xf32>
    %5 = vector.broadcast %4 : vector<1x64xf32> to vector<16x64xf32>
    %6 = arith.addf %3, %5 : vector<16x64xf32>
    %cst_5 = arith.constant 0.000000e+00 : f32
    %7 = vector.broadcast %cst_5 : f32 to vector<16x64xf32>
    %8 = arith.maximumf %6, %7 : vector<16x64xf32>
    %9 = arith.truncf %8 : vector<16x64xf32> to vector<16x64xbf16>
    %c0_6 = arith.constant 0 : index
    %c0_7 = arith.constant 0 : index
    %10 = vector.load %arg4[%c0_6, %c0_7] : memref<64x32xbf16, #tpu.memory_space<vmem>>, vector<64x32xbf16>
    %cst_8 = arith.constant dense<0.000000e+00> : vector<16x32xf32>
    %11 = tpu.matmul %9, %10, %cst_8 {dimension_numbers = #tpu.dot_dimension_numbers<[1], [0], [0], [1], [0, 0, 1, 1], [], []>} : vector<16x64xbf16>, vector<64x32xbf16>, vector<16x32xf32> -> vector<16x32xf32>
    %c0_9 = arith.constant 0 : index
    %c0_10 = arith.constant 0 : index
    %12 = vector.load %arg5[%c0_9, %c0_10] : memref<1x32xf32, #tpu.memory_space<vmem>>, vector<1x32xf32>
    %13 = vector.broadcast %12 : vector<1x32xf32> to vector<16x32xf32>
    %14 = arith.addf %11, %13 : vector<16x32xf32>
    %cst_11 = arith.constant 0.000000e+00 : f32
    %15 = vector.broadcast %cst_11 : f32 to vector<16x32xf32>
    %16 = arith.maximumf %14, %15 : vector<16x32xf32>
    %17 = arith.truncf %16 : vector<16x32xf32> to vector<16x32xbf16>
    %c0_12 = arith.constant 0 : index
    %c0_13 = arith.constant 0 : index
    %18 = vector.load %arg6[%c0_12, %c0_13] : memref<32x32xbf16, #tpu.memory_space<vmem>>, vector<32x32xbf16>
    %cst_14 = arith.constant dense<0.000000e+00> : vector<16x32xf32>
    %19 = tpu.matmul %17, %18, %cst_14 {dimension_numbers = #tpu.dot_dimension_numbers<[1], [0], [0], [1], [0, 0, 1, 1], [], []>} : vector<16x32xbf16>, vector<32x32xbf16>, vector<16x32xf32> -> vector<16x32xf32>
    %c0_15 = arith.constant 0 : index
    %c0_16 = arith.constant 0 : index
    %20 = vector.load %arg7[%c0_15, %c0_16] : memref<1x32xf32, #tpu.memory_space<vmem>>, vector<1x32xf32>
    %21 = vector.broadcast %20 : vector<1x32xf32> to vector<16x32xf32>
    %22 = arith.addf %19, %21 : vector<16x32xf32>
    %c0_17 = arith.constant 0 : index
    %c0_18 = arith.constant 0 : index
    %23 = vector.load %arg8[%c0_17, %c0_18] : memref<16x32xf32, #tpu.memory_space<vmem>>, vector<16x32xf32>
    tpu.vector_store %arg8[%c0_17, %c0_18], %22 {strides = array<i32>} : memref<16x32xf32, #tpu.memory_space<vmem>>, vector<16x32xf32>,
    return
  }
  func.func @transform_0(%arg0: i32) -> (i32, i32) {
    %c0_i32 = arith.constant 0 : i32
    %c0_i32_0 = arith.constant 0 : i32
    return %arg0, %c0_i32 : i32, i32
  }
  func.func @transform_1(%arg0: i32) -> (i32, i32) {
    %c0_i32 = arith.constant 0 : i32
    %c0_i32_0 = arith.constant 0 : i32
    %c0_i32_1 = arith.constant 0 : i32
    return %c0_i32, %c0_i32_0 : i32, i32
  }
  func.func @transform_2(%arg0: i32) -> (i32, i32) {
    %c0_i32 = arith.constant 0 : i32
    %c0_i32_0 = arith.constant 0 : i32
    %c0_i32_1 = arith.constant 0 : i32
    return %c0_i32, %c0_i32_0 : i32, i32
  }
  func.func @transform_3(%arg0: i32) -> (i32, i32) {
    %c0_i32 = arith.constant 0 : i32
    %c0_i32_0 = arith.constant 0 : i32
    %c0_i32_1 = arith.constant 0 : i32
    return %c0_i32, %c0_i32_0 : i32, i32
  }
  func.func @transform_4(%arg0: i32) -> (i32, i32) {
    %c0_i32 = arith.constant 0 : i32
    %c0_i32_0 = arith.constant 0 : i32
    %c0_i32_1 = arith.constant 0 : i32
    return %c0_i32, %c0_i32_0 : i32, i32
  }
  func.func @transform_5(%arg0: i32) -> (i32, i32) {
    %c0_i32 = arith.constant 0 : i32
    %c0_i32_0 = arith.constant 0 : i32
    %c0_i32_1 = arith.constant 0 : i32
    return %c0_i32, %c0_i32_0 : i32, i32
  }
  func.func @transform_6(%arg0: i32) -> (i32, i32) {
    %c0_i32 = arith.constant 0 : i32
    %c0_i32_0 = arith.constant 0 : i32
    %c0_i32_1 = arith.constant 0 : i32
    return %c0_i32, %c0_i32_0 : i32, i32
  }
  func.func @transform_7(%arg0: i32) -> (i32, i32) {
    %c0_i32 = arith.constant 0 : i32
    %c0_i32_0 = arith.constant 0 : i32
    return %arg0, %c0_i32 : i32, i32
  }
}

</mosaic_0001>

<llo_original>
// kernel: tpu_custom_call.1
$region0: #{tpu_custom_call.1}
  #allocation0 [shape = 'u32[]', space=smem, size = 0x4, offset = 0x4, fixed_abs, tag = 'smem constant byte address 0x4 - core index']
  #allocation1 [shape = 'u32[72,128]{1,0:T(1,128)}', space=vmem, size = 0x9000, scoped, tag = 'internal scratch']
  %s0 = inlined_call_operand.vmem [shape: f32[16,32], index: 0, kind: input, shape index: {}]
  %s1 = inlined_call_operand.vmem [shape: bf16[32,64], index: 1, kind: input, shape index: {}]
  %s2 = inlined_call_operand.vmem [shape: f32[1,64], index: 2, kind: input, shape index: {}]
  %s3 = inlined_call_operand.vmem [shape: bf16[64,32], index: 3, kind: input, shape index: {}]
  %s4 = inlined_call_operand.vmem [shape: f32[1,32], index: 4, kind: input, shape index: {}]
  %s5 = inlined_call_operand.vmem [shape: bf16[32,32], index: 5, kind: input, shape index: {}]
  %s6 = inlined_call_operand.vmem [shape: f32[1,32], index: 6, kind: input, shape index: {}]
  %s7 = inlined_call_operand.hbm [shape: f32[16,32], index: 7, kind: output, shape index: {}]
  %s8 = sld [smem:[#allocation0]]
  $region38: #{tpu_custom_call.1} parent=0
    _
  %s10 = ssub.s32 1, %s8
  %s11 = scalar_select 0, %s10, %s8
  $region1: #{tpu_custom_call.1} parent=0
    #allocation2 [shape = 'u8[8192]{0}', space=vmem, size = 0x2000, scoped, tag = 'output window, operand 0, single buffered']
    #allocation3 [shape = 's32[1]{0}', space=sflag, size = 0x4, scoped, tag = 'scoped memory for tpu_custom_call.1']
    %12 = vsyncpa [#allocation3], 0
    // Predicated region
    $region2: #{tpu_custom_call.1} parent=1 // pred_check
      _
    $region3: #{tpu_custom_call.1} parent=1 // pred_check_branch
      %14 = sbr.rel (0) target = $region5
    $region4: #{tpu_custom_call.1} parent=1 // pred_region
      _
    $region5: #{tpu_custom_call.1} parent=1 // pred_fallthru
      _
    // Predicated region
    $region6: #{tpu_custom_call.1} parent=1 // pred_check
      _
    $region7: #{tpu_custom_call.1} parent=1 // pred_check_branch
      %16 = sbr.rel (0) target = $region9
    $region8: #{tpu_custom_call.1} parent=1 // pred_region
      _
    $region9: #{tpu_custom_call.1} parent=1 // pred_fallthru
      _
    // Predicated region
    $region10: #{tpu_custom_call.1} parent=1 // pred_check
      _
    $region11: #{tpu_custom_call.1} parent=1 // pred_check_branch
      %18 = sbr.rel (0) target = $region13
    $region12: #{tpu_custom_call.1} parent=1 // pred_region
      _
    $region13: #{tpu_custom_call.1} parent=1 // pred_fallthru
      _
    // Predicated region
    $region14: #{tpu_custom_call.1} parent=1 // pred_check
      _
    $region15: #{tpu_custom_call.1} parent=1 // pred_check_branch
      %20 = sbr.rel (0) target = $region17
    $region16: #{tpu_custom_call.1} parent=1 // pred_region
      _
    $region17: #{tpu_custom_call.1} parent=1 // pred_fallthru
      _
    // Predicated region
    $region18: #{tpu_custom_call.1} parent=1 // pred_check
      _
    $region19: #{tpu_custom_call.1} parent=1 // pred_check_branch
      %22 = sbr.rel (0) target = $region21
    $region20: #{tpu_custom_call.1} parent=1 // pred_region
      _
    $region21: #{tpu_custom_call.1} parent=1 // pred_fallthru
      _
    // Predicated region
    $region22: #{tpu_custom_call.1} parent=1 // pred_check
      _
    $region23: #{tpu_custom_call.1} parent=1 // pred_check_branch
      %24 = sbr.rel (0) target = $region25
    $region24: #{tpu_custom_call.1} parent=1 // pred_region
      _
    $region25: #{tpu_custom_call.1} parent=1 // pred_fallthru
      _
    // Predicated region
    $region26: #{tpu_custom_call.1} parent=1 // pred_check
      _
    $region27: #{tpu_custom_call.1} parent=1 // pred_check_branch
      %26 = sbr.rel (0) target = $region29
    $region28: #{tpu_custom_call.1} parent=1 // pred_region
      _
    $region29: #{tpu_custom_call.1} parent=1 // pred_fallthru
      _
    %v28 = vld [vmem:[%s0] sm:$0xff]
    %v29 = vld [vmem:[%s0 + $0x8] sm:$0xff]
    %v30 = vpack.c.bf16 %v29, %v28
    %v31 = vld [vmem:[%s1] sm:$0xf]
    %v32 = vld [vmem:[%s1 + $0x4] sm:$0xf]
    %v33 = vld [vmem:[%s1 + $0x8] sm:$0xf]
    %v34 = vld [vmem:[%s1 + $0xc] sm:$0xf]
    %v35 = vld [vmem:[%s2] sm:$0x1]
    %v37 = vperm.slane %v35, 0
    %v43 = vunpack.c.l.b16 %v31
    %v44 = vunpack.c.l.b16 %v32
    %v45 = vunpack.c.l.b16 %v33
    %v46 = vunpack.c.l.b16 %v34
    %v47 = vpack.c.b16 %v44, %v43
    %v48 = vpack.c.b16 %v46, %v45
    %vm51 = vcmask 261120
    %v53 = vsel %vm51, %v30, 0
    %55 = vmatpush.bf16.msra.mxu0 0
    %56 = vmatpush.bf16.msra.mxu0 0
    %57 = vmatpush.bf16.msra.mxu0 0
    %58 = vmatpush.bf16.msra.mxu0 0
    %59 = vmatpush.bf16.msra.mxu0 0
    %60 = vmatpush.bf16.msra.mxu0 0
    %61 = vmatpush.bf16.msra.mxu0 %v48
    %62 = vmatpush.bf16.msra.mxu0 %v47
    %63 = vmatmul.bf16.gmra.mxu0 %v53
    %v64 = vpop.f32.mrf.mxu0
    %v65 = vadd.f32 %v37, %v64
    %v66 = vpop.f32.mrf.mxu0
    %v67 = vadd.f32 %v37, %v66
    %68 = vdwg.mxu0
    %v69 = vmax.f32 %v65, 0.0
    %v70 = vmax.f32 %v67, 0.0
    %v71 = vpack.c.bf16 %v70, %v69
    %v72 = vld [vmem:[%s3] sm:$0xf]
    %v73 = vld [vmem:[%s3 + $0x4] sm:$0xf]
    %v74 = vld [vmem:[%s3 + $0x8] sm:$0xf]
    %v75 = vld [vmem:[%s3 + $0xc] sm:$0xf]
    %v76 = vld [vmem:[%s3 + $0x10] sm:$0xf]
    %v77 = vld [vmem:[%s3 + $0x14] sm:$0xf]
    %v78 = vld [vmem:[%s3 + $0x18] sm:$0xf]
    %v79 = vld [vmem:[%s3 + $0x1c] sm:$0xf]
    %v80 = vld [vmem:[%s4] sm:$0x1]
    %v82 = vperm.slane %v80, 0
    %v92 = vunpack.c.l.b16 %v72
    %v93 = vunpack.c.l.b16 %v73
    %v94 = vunpack.c.l.b16 %v74
    %v95 = vunpack.c.l.b16 %v75
    %v96 = vunpack.c.l.b16 %v76
    %v97 = vunpack.c.l.b16 %v77
    %v98 = vunpack.c.l.b16 %v78
    %v99 = vunpack.c.l.b16 %v79
    %v100 = vpack.c.b16 %v93, %v92
    %v101 = vpack.c.b16 %v95, %v94
    %v102 = vpack.c.b16 %v97, %v96
    %v103 = vpack.c.b16 %v99, %v98
    %vm108 = vcmask 523264
    %v110 = vsel %vm108, %v71, 0
    %112 = vmatpush.bf16.msra.mxu0 0
    %113 = vmatpush.bf16.msra.mxu0 0
    %114 = vmatpush.bf16.msra.mxu0 0
    %115 = vmatpush.bf16.msra.mxu0 0
    %116 = vmatpush.bf16.msra.mxu0 %v103
    %117 = vmatpush.bf16.msra.mxu0 %v102
    %118 = vmatpush.bf16.msra.mxu0 %v101
    %119 = vmatpush.bf16.msra.mxu0 %v100
    %120 = vmatmul.bf16.gmra.mxu0 %v110
    %v121 = vpop.f32.mrf.mxu0
    %v122 = vadd.f32 %v82, %v121
    %v123 = vpop.f32.mrf.mxu0
    %v124 = vadd.f32 %v82, %v123
    %125 = vdwg.mxu0
    %v126 = vmax.f32 %v122, 0.0
    %v127 = vmax.f32 %v124, 0.0
    %v128 = vpack.c.bf16 %v127, %v126
    %v129 = vld [vmem:[%s5] sm:$0xf]
    %v130 = vld [vmem:[%s5 + $0x4] sm:$0xf]
    %v131 = vld [vmem:[%s5 + $0x8] sm:$0xf]
    %v132 = vld [vmem:[%s5 + $0xc] sm:$0xf]
    %v133 = vld [vmem:[%s6] sm:$0x1]
    %v135 = vperm.slane %v133, 0
    %v141 = vunpack.c.l.b16 %v129
    %v142 = vunpack.c.l.b16 %v130
    %v143 = vunpack.c.l.b16 %v131
    %v144 = vunpack.c.l.b16 %v132
    %v145 = vpack.c.b16 %v142, %v141
    %v146 = vpack.c.b16 %v144, %v143
    %v150 = vsel %vm51, %v128, 0
    %152 = vmatpush.bf16.msra.mxu0 0
    %153 = vmatpush.bf16.msra.mxu0 0
    %154 = vmatpush.bf16.msra.mxu0 0
    %155 = vmatpush.bf16.msra.mxu0 0
    %156 = vmatpush.bf16.msra.mxu0 0
    %157 = vmatpush.bf16.msra.mxu0 0
    %158 = vmatpush.bf16.msra.mxu0 %v146
    %159 = vmatpush.bf16.msra.mxu0 %v145
    %160 = vmatmul.bf16.gmra.mxu0 %v150
    %v161 = vpop.f32.mrf.mxu0
    %v162 = vadd.f32 %v135, %v161
    %v163 = vpop.f32.mrf.mxu0
    %v164 = vadd.f32 %v135, %v163
    %165 = vdwg.mxu0
    %166 = vst.msk [vmem:[#allocation2] sm:$0xff] %vm51, %v162
    %167 = vst.msk [vmem:[#allocation2 + $0x8] sm:$0xff] %vm51, %v164
    // Predicated region
    $region30: #{tpu_custom_call.1} parent=1 // pred_check
      _
    $region31: #{tpu_custom_call.1} parent=1 // pred_check_branch
      %169 = sbr.rel (0) target = $region33
    $region32: #{tpu_custom_call.1} parent=1 // pred_region
      %171 = vsyncadd [#allocation3], 0
      %s172 = sshll.u32 [#allocation2], 4
      %s173 = int_to_ptr.vmem [resolvable:$true] %s172
      %s174 = sshll.u32 %s7, 4
      %s175 = int_to_ptr.hbm [resolvable:$true] %s174
      %180 = dma.vmem_to_hbm [thread:$0]  %s173, 256, %s175, [#allocation3], 128, 128, 8
    $region33: #{tpu_custom_call.1} parent=1 // pred_fallthru
      _
    // Predicated region
    $region34: #{tpu_custom_call.1} parent=1 // pred_check
      _
    $region35: #{tpu_custom_call.1} parent=1 // pred_check_branch
      %182 = sbr.rel (0) target = $region37
    $region36: #{tpu_custom_call.1} parent=1 // pred_region
      %184 = dma.done [#allocation3], 256
    $region37: #{tpu_custom_call.1} parent=1 // pred_fallthru
      _
    %185 = vsyncpa [#allocation3], 1

</llo_original>
